<compile_context>
chip_gen: v7x
topology: tpu7x:2x2x1
jax: 0.10.0
libtpu: 0.0.40
codegen_flags: <defaults>
</compile_context>

<pallas_src>
import jax
import jax.numpy as jnp
from jax.experimental import pallas as pl
from jax.experimental.pallas import tpu as pltpu

EPS = 1e-5          # nn.BatchNorm2d default
NEG_SLOPE = 0.01    # nn.LeakyReLU default


def convt_kernel(p_ref, w_ref, gamma_ref, beta_ref, out_ref):
    M = p_ref.shape[0]
    Cout = gamma_ref.shape[1]

    # ---- whole transposed conv = one MXU matmul (bf16 operands, f32 acc) ---
    y = jnp.dot(p_ref[...], w_ref[...],
                preferred_element_type=jnp.float32)            # (M, 4*Cout)
    # Conv bias intentionally omitted: training-mode BN subtracts the batch
    # mean, so the bias cancels exactly.

    # ---- BatchNorm2d, training mode (batch stats, biased var, eps=1e-5) ----
    inv_n = 1.0 / float(M * 4)                   # total output pixels / chan
    s1 = jnp.sum(y, axis=0, keepdims=True)       # (1, 4*Cout)
    s2 = jnp.sum(y * y, axis=0, keepdims=True)   # (1, 4*Cout)
    # binary fold of the 4 sub-pixel lane blocks (XLU rolls, off the VPU path)
    s1 = s1 + pltpu.roll(s1, shift=2 * Cout, axis=1)
    s2 = s2 + pltpu.roll(s2, shift=2 * Cout, axis=1)
    s1 = s1 + pltpu.roll(s1, shift=Cout, axis=1)
    s2 = s2 + pltpu.roll(s2, shift=Cout, axis=1)
    mean = s1[:, :Cout] * inv_n                  # (1, Cout)
    var = s2[:, :Cout] * inv_n - mean * mean     # single-pass biased variance
    inv_std = jax.lax.rsqrt(var + EPS)
    scale = gamma_ref[...] * inv_std             # (1, Cout)
    shift = beta_ref[...] - mean * scale         # (1, Cout)
    scale4 = jnp.concatenate([scale, scale, scale, scale], axis=-1)  # (1,4C)
    shift4 = jnp.concatenate([shift, shift, shift, shift], axis=-1)
    z = y * scale4 + shift4

    # ---- LeakyReLU(0.01): single vmax ---------------------------------------
    z = jnp.maximum(z, NEG_SLOPE * z)

    out_ref[...] = z.astype(out_ref.dtype)


def convt_forward(x_nchw, params):
    """PyTorch-style NCHW in / NCHW out.  The kernel works on a packed
    lane-dense (B*H*W, 4*Cin) -> (B*H*W, 4*Cout) sub-pixel layout; patch
    packing and the sub-pixel -> NCHW unpack are wrapper-side layout plumbing.
    """
    x = jnp.transpose(x_nchw, (0, 2, 3, 1)).astype(jnp.float32)   # NHWC
    B, H, W, Cin = x.shape
    Wt = params['w']                       # PyTorch layout (Cin, Cout, kH, kW)
    Cout = Wt.shape[1]
    M = B * H * W

    # Pack the 9 transposed-conv taps into a (4*Cin, 4*Cout) block matrix.
    # Row blocks: input taps [x[i,j], x[i,j+1], x[i+1,j], x[i+1,j+1]]
    # Col blocks: output sub-pixels [(even,even),(even,odd),(odd,even),(odd,odd)]
    # Derived from oh = 2*ih - 1 + kh (stride=2, padding=1, output_padding=1).
    w = lambda kh, kw: Wt[:, :, kh, kw]
    Z = jnp.zeros((Cin, Cout), jnp.float32)
    w_big = jnp.concatenate([
        jnp.concatenate([w(1, 1), w(1, 2), w(2, 1), w(2, 2)], axis=1),
        jnp.concatenate([Z,       w(1, 0), Z,       w(2, 0)], axis=1),
        jnp.concatenate([Z,       Z,       w(0, 1), w(0, 2)], axis=1),
        jnp.concatenate([Z,       Z,       Z,       w(0, 0)], axis=1),
    ], axis=0).astype(jnp.bfloat16)                               # (4Cin, 4Cout)

    # Wrapper-side im2col: lane-dense (M, 4*Cin) bf16 patch matrix (the 1-px
    # bottom/right zero border supplies the out-of-range taps).
    xp = jnp.pad(x, ((0, 0), (0, 1), (0, 1), (0, 0)))             # (B,H+1,W+1,C)
    patches = jnp.concatenate([xp[:, :H, :W, :],    # x[i,   j  ]
                               xp[:, :H, 1:, :],    # x[i,   j+1]
                               xp[:, 1:, :W, :],    # x[i+1, j  ]
                               xp[:, 1:, 1:, :]],   # x[i+1, j+1]
                              axis=-1)
    patches = patches.reshape(M, 4 * Cin).astype(jnp.bfloat16)

    gamma = params['gamma'].reshape(1, Cout).astype(jnp.float32)
    beta = params['beta'].reshape(1, Cout).astype(jnp.float32)

    out_packed = pl.pallas_call(
        convt_kernel,
        out_shape=jax.ShapeDtypeStruct((M, 4 * Cout), jnp.float32),
        in_specs=[pl.BlockSpec(memory_space=pltpu.MemorySpace.VMEM)] * 4,
        out_specs=pl.BlockSpec(memory_space=pltpu.MemorySpace.VMEM),
    )(patches, w_big, gamma, beta)

    # unpack: (M, 4*Cout) -> (B, H, W, dh, dw, C) -> (B, 2H, 2W, C) -> NCHW
    y = out_packed.reshape(B, H, W, 2, 2, Cout)
    y = jnp.transpose(y, (0, 1, 3, 2, 4, 5)).reshape(B, 2 * H, 2 * W, Cout)
    return jnp.transpose(y, (0, 3, 1, 2))


# ---------------------------------------------------------------------------
# Pure-JAX reference (independent formulation) used only for correctness.
# ---------------------------------------------------------------------------
def convt_reference(x_nchw, params):
    x = jnp.transpose(x_nchw, (0, 2, 3, 1)).astype(jnp.float32)   # NHWC
    Wt = params['w']                                              # (Cin,Cout,3,3)
    # ConvTranspose2d(k=3, s=2, p=1, op=1) == regular conv on the lhs-dilated
    # input with padding [(1,2),(1,2)] and the spatially flipped kernel.
    w_hwio = jnp.transpose(Wt[:, :, ::-1, ::-1], (2, 3, 0, 1))    # (3,3,Cin,Cout)
    y = jax.lax.conv_general_dilated(
        x, w_hwio, window_strides=(1, 1), padding=[(1, 2), (1, 2)],
        lhs_dilation=(2, 2), dimension_numbers=('NHWC', 'HWIO', 'NHWC'))
    y = y + params['b'].reshape(1, 1, 1, -1)
    mean = jnp.mean(y, axis=(0, 1, 2), keepdims=True)
    var = jnp.mean((y - mean) ** 2, axis=(0, 1, 2), keepdims=True)
    y = (y - mean) * jax.lax.rsqrt(var + EPS) * params['gamma'].reshape(1, 1, 1, -1) \
        + params['beta'].reshape(1, 1, 1, -1)
    y = jnp.where(y > 0, y, NEG_SLOPE * y)
    return jnp.transpose(y, (0, 3, 1, 2))


if __name__ == "__main__":
    B, Cin, H, W = 2, 32, 8, 8        # in_ch=32; module default ch=32
    Cout = 32
    key = jax.random.PRNGKey(0)
    kx, kw, kb, kg, kbe = jax.random.split(key, 5)
    x = jax.random.normal(kx, (B, Cin, H, W), jnp.float32)        # NCHW
    params = {
        'w': 0.1 * jax.random.normal(kw, (Cin, Cout, 3, 3), jnp.float32),
        'b': 0.1 * jax.random.normal(kb, (Cout,), jnp.float32),
        'gamma': 1.0 + 0.1 * jax.random.normal(kg, (Cout,), jnp.float32),
        'beta': 0.1 * jax.random.normal(kbe, (Cout,), jnp.float32),
    }

    out = jax.block_until_ready(convt_forward(x, params))
    ref = jax.block_until_ready(convt_reference(x, params))

    assert out.shape == (B, Cout, 2 * H, 2 * W)
    max_err = float(jnp.max(jnp.abs(out - ref)))
    # bf16 MXU operands (f32 accumulation) -> small deviation vs f32 reference.
    if not jnp.allclose(out, ref, rtol=2e-2, atol=2e-2):
        raise AssertionError(f"Pallas kernel mismatch vs reference, max_err={max_err}")
    print("KERNEL_OK")
</pallas_src>

<mosaic_0001>
module attributes {stable_mosaic.version = 11 : i64} {
  func.func @convt_kernel(%arg0: memref<128x128xbf16, #tpu.memory_space<vmem>>, %arg1: memref<128x128xbf16, #tpu.memory_space<vmem>>, %arg2: memref<1x32xf32, #tpu.memory_space<vmem>>, %arg3: memref<1x32xf32, #tpu.memory_space<vmem>>, %arg4: memref<128x128xf32, #tpu.memory_space<vmem>>) attributes {dimension_semantics = [], scalar_prefetch = 0 : i64, scratch_operands = 0 : i64, tpu.core_type = #tpu.core_type<tc>} {
    %c0 = arith.constant 0 : index
    %c0_0 = arith.constant 0 : index
    %0 = vector.load %arg0[%c0, %c0_0] : memref<128x128xbf16, #tpu.memory_space<vmem>>, vector<128x128xbf16>
    %c0_1 = arith.constant 0 : index
    %c0_2 = arith.constant 0 : index
    %1 = vector.load %arg1[%c0_1, %c0_2] : memref<128x128xbf16, #tpu.memory_space<vmem>>, vector<128x128xbf16>
    %cst = arith.constant dense<0.000000e+00> : vector<128x128xf32>
    %2 = tpu.matmul %0, %1, %cst {dimension_numbers = #tpu.dot_dimension_numbers<[1], [0], [0], [1], [0, 0, 1, 1], [], []>} : vector<128x128xbf16>, vector<128x128xbf16>, vector<128x128xf32> -> vector<128x128xf32>
    %cst_3 = arith.constant dense<0.000000e+00> : vector<128xf32>
    %3 = vector.multi_reduction <add>, %2, %cst_3 [0] : vector<128x128xf32> to vector<128xf32>
    %4 = vector.shape_cast %3 : vector<128xf32> to vector<1x128xf32>
    %5 = arith.mulf %2, %2 : vector<128x128xf32>
    %cst_4 = arith.constant dense<0.000000e+00> : vector<128xf32>
    %6 = vector.multi_reduction <add>, %5, %cst_4 [0] : vector<128x128xf32> to vector<128xf32>
    %7 = vector.shape_cast %6 : vector<128xf32> to vector<1x128xf32>
    %c64_i32 = arith.constant 64 : i32
    %8 = tpu.dynamic_rotate %4 by %c64_i32 dim 1 : vector<1x128xf32>, i32 -> vector<1x128xf32>
    %9 = arith.addf %4, %8 : vector<1x128xf32>
    %c64_i32_5 = arith.constant 64 : i32
    %10 = tpu.dynamic_rotate %7 by %c64_i32_5 dim 1 : vector<1x128xf32>, i32 -> vector<1x128xf32>
    %11 = arith.addf %7, %10 : vector<1x128xf32>
    %c32_i32 = arith.constant 32 : i32
    %12 = tpu.dynamic_rotate %9 by %c32_i32 dim 1 : vector<1x128xf32>, i32 -> vector<1x128xf32>
    %13 = arith.addf %9, %12 : vector<1x128xf32>
    %c32_i32_6 = arith.constant 32 : i32
    %14 = tpu.dynamic_rotate %11 by %c32_i32_6 dim 1 : vector<1x128xf32>, i32 -> vector<1x128xf32>
    %15 = arith.addf %11, %14 : vector<1x128xf32>
    %16 = vector.extract_strided_slice %13 {offsets = [0, 0], sizes = [1, 32], strides = [1, 1]} : vector<1x128xf32> to vector<1x32xf32>
    %cst_7 = arith.constant 0.001953125 : f32
    %17 = vector.broadcast %cst_7 : f32 to vector<1x32xf32>
    %18 = arith.mulf %16, %17 : vector<1x32xf32>
    %19 = vector.extract_strided_slice %15 {offsets = [0, 0], sizes = [1, 32], strides = [1, 1]} : vector<1x128xf32> to vector<1x32xf32>
    %cst_8 = arith.constant 0.001953125 : f32
    %20 = vector.broadcast %cst_8 : f32 to vector<1x32xf32>
    %21 = arith.mulf %19, %20 : vector<1x32xf32>
    %22 = arith.mulf %18, %18 : vector<1x32xf32>
    %23 = arith.subf %21, %22 : vector<1x32xf32>
    %cst_9 = arith.constant 9.99999974E-6 : f32
    %24 = vector.broadcast %cst_9 : f32 to vector<1x32xf32>
    %25 = arith.addf %23, %24 : vector<1x32xf32>
    %26 = math.rsqrt %25 : vector<1x32xf32>
    %c0_10 = arith.constant 0 : index
    %c0_11 = arith.constant 0 : index
    %27 = vector.load %arg2[%c0_10, %c0_11] : memref<1x32xf32, #tpu.memory_space<vmem>>, vector<1x32xf32>
    %28 = arith.mulf %27, %26 : vector<1x32xf32>
    %c0_12 = arith.constant 0 : index
    %c0_13 = arith.constant 0 : index
    %29 = vector.load %arg3[%c0_12, %c0_13] : memref<1x32xf32, #tpu.memory_space<vmem>>, vector<1x32xf32>
    %30 = arith.mulf %18, %28 : vector<1x32xf32>
    %31 = arith.subf %29, %30 : vector<1x32xf32>
    %32 = tpu.concatenate %28, %28, %28, %28 in 1 : vector<1x32xf32>, vector<1x32xf32>, vector<1x32xf32>, vector<1x32xf32> -> vector<1x128xf32>
    %33 = tpu.concatenate %31, %31, %31, %31 in 1 : vector<1x32xf32>, vector<1x32xf32>, vector<1x32xf32>, vector<1x32xf32> -> vector<1x128xf32>
    %34 = vector.broadcast %32 : vector<1x128xf32> to vector<128x128xf32>
    %35 = arith.mulf %2, %34 : vector<128x128xf32>
    %36 = vector.broadcast %33 : vector<1x128xf32> to vector<128x128xf32>
    %37 = arith.addf %35, %36 : vector<128x128xf32>
    %cst_14 = arith.constant 0.00999999977 : f32
    %38 = vector.broadcast %cst_14 : f32 to vector<128x128xf32>
    %39 = arith.mulf %38, %37 : vector<128x128xf32>
    %40 = arith.maximumf %37, %39 : vector<128x128xf32>
    %c0_15 = arith.constant 0 : index
    %c0_16 = arith.constant 0 : index
    %41 = vector.load %arg4[%c0_15, %c0_16] : memref<128x128xf32, #tpu.memory_space<vmem>>, vector<128x128xf32>
    tpu.vector_store %arg4[%c0_15, %c0_16], %40 {strides = array<i32>} : memref<128x128xf32, #tpu.memory_space<vmem>>, vector<128x128xf32>,
    return
  }
}

</mosaic_0001>

<llo_original>
// kernel: tpu_custom_call.1
$region0: #{tpu_custom_call.1}
  #allocation0 [shape = 'u32[]', space=smem, size = 0x4, offset = 0x4, fixed_abs, tag = 'smem constant byte address 0x4 - core index']
  #allocation1 [shape = 'u32[144,128]{1,0:T(1,128)}', space=vmem, size = 0x12000, scoped, tag = 'internal scratch']
  %s0 = inlined_call_operand.hbm [shape: bf16[128,128], index: 0, kind: input, shape index: {}]
  %s1 = inlined_call_operand.hbm [shape: bf16[128,128], index: 1, kind: input, shape index: {}]
  %s2 = inlined_call_operand.vmem [shape: f32[1,32], index: 2, kind: input, shape index: {}]
  %s3 = inlined_call_operand.vmem [shape: f32[1,32], index: 3, kind: input, shape index: {}]
  %s4 = inlined_call_operand.hbm [shape: f32[128,128], index: 4, kind: output, shape index: {}]
  %s5 = sld [smem:[#allocation0]]
  $region34: #{tpu_custom_call.1} parent=0
    _
  %s7 = ssub.s32 1, %s5
  %s8 = scalar_select 0, %s7, %s5
  $region1: #{tpu_custom_call.1} parent=0
    #allocation2 [shape = 'u8[32768]{0}', space=vmem, size = 0x8000, scoped, tag = 'input window, operand 0, single buffered']
    #allocation3 [shape = 's32[1]{0}', space=sflag, size = 0x4, scoped, tag = 'scoped memory for tpu_custom_call.1']
    #allocation4 [shape = 's32[1]{0}', space=sflag, size = 0x4, scoped, tag = 'scoped memory for tpu_custom_call.1']
    #allocation5 [shape = 'u8[32768]{0}', space=vmem, size = 0x8000, scoped, tag = 'input window, operand 1, single buffered']
    #allocation6 [shape = 's32[1]{0}', space=sflag, size = 0x4, scoped, tag = 'scoped memory for tpu_custom_call.1']
    #allocation7 [shape = 'u8[65536]{0}', space=vmem, size = 0x10000, scoped, tag = 'output window, operand 0, single buffered']
    %9 = vsyncpa [#allocation3], 0
    %10 = vsyncpa [#allocation6], 0
    %11 = vsyncpa [#allocation4], 0
    // Predicated region
    $region2: #{tpu_custom_call.1} parent=1 // pred_check
      _
    $region3: #{tpu_custom_call.1} parent=1 // pred_check_branch
      %13 = sbr.rel (0) target = $region5
    $region4: #{tpu_custom_call.1} parent=1 // pred_region
      %s15 = ssub.s32 1024, 1024
      %16 = vsyncadd [#allocation3], %s15
      %s17 = sshll.u32 [#allocation2], 4
      %s18 = int_to_ptr.vmem [resolvable:$true] %s17
      %23 = dma.hbm_to_vmem [thread:$0]  %s0, 1024, %s18, [#allocation3], 64, 64, 4
    $region5: #{tpu_custom_call.1} parent=1 // pred_fallthru
      _
    // Predicated region
    $region6: #{tpu_custom_call.1} parent=1 // pred_check
      _
    $region7: #{tpu_custom_call.1} parent=1 // pred_check_branch
      %25 = sbr.rel (0) target = $region9
    $region8: #{tpu_custom_call.1} parent=1 // pred_region
      %s27 = ssub.s32 1024, 1024
      %28 = vsyncadd [#allocation6], %s27
      %s29 = sshll.u32 [#allocation5], 4
      %s30 = int_to_ptr.vmem [resolvable:$true] %s29
      %35 = dma.hbm_to_vmem [thread:$0]  %s1, 1024, %s30, [#allocation6], 64, 64, 4
    $region9: #{tpu_custom_call.1} parent=1 // pred_fallthru
      _
    // Predicated region
    $region10: #{tpu_custom_call.1} parent=1 // pred_check
      _
    $region11: #{tpu_custom_call.1} parent=1 // pred_check_branch
      %37 = sbr.rel (0) target = $region13
    $region12: #{tpu_custom_call.1} parent=1 // pred_region
      _
    $region13: #{tpu_custom_call.1} parent=1 // pred_fallthru
      _
    // Predicated region
    $region14: #{tpu_custom_call.1} parent=1 // pred_check
      _
    $region15: #{tpu_custom_call.1} parent=1 // pred_check_branch
      %39 = sbr.rel (0) target = $region17
    $region16: #{tpu_custom_call.1} parent=1 // pred_region
      _
    $region17: #{tpu_custom_call.1} parent=1 // pred_fallthru
      _
    // Predicated region
    $region18: #{tpu_custom_call.1} parent=1 // pred_check
      _
    $region19: #{tpu_custom_call.1} parent=1 // pred_check_branch
      %41 = sbr.rel (0) target = $region21
    $region20: #{tpu_custom_call.1} parent=1 // pred_region
      %42 = dma.done [#allocation3], 1024
    $region21: #{tpu_custom_call.1} parent=1 // pred_fallthru
      _
    // Predicated region
    $region22: #{tpu_custom_call.1} parent=1 // pred_check
      _
    $region23: #{tpu_custom_call.1} parent=1 // pred_check_branch
      %44 = sbr.rel (0) target = $region25
    $region24: #{tpu_custom_call.1} parent=1 // pred_region
      %45 = dma.done [#allocation6], 1024
    $region25: #{tpu_custom_call.1} parent=1 // pred_fallthru
      _
    %v47 = vld [vmem:[#allocation2] sm:$0xf]
    %v48 = vld [vmem:[#allocation2 + $0x4] sm:$0xf]
    %v49 = vld [vmem:[#allocation2 + $0x8] sm:$0xf]
    %v50 = vld [vmem:[#allocation2 + $0xc] sm:$0xf]
    %v51 = vld [vmem:[#allocation2 + $0x10] sm:$0xf]
    %v52 = vld [vmem:[#allocation2 + $0x14] sm:$0xf]
    %v53 = vld [vmem:[#allocation2 + $0x18] sm:$0xf]
    %v54 = vld [vmem:[#allocation2 + $0x1c] sm:$0xf]
    %v55 = vld [vmem:[#allocation2 + $0x20] sm:$0xf]
    %v56 = vld [vmem:[#allocation2 + $0x24] sm:$0xf]
    %v57 = vld [vmem:[#allocation2 + $0x28] sm:$0xf]
    %v58 = vld [vmem:[#allocation2 + $0x2c] sm:$0xf]
    %v59 = vld [vmem:[#allocation2 + $0x30] sm:$0xf]
    %v60 = vld [vmem:[#allocation2 + $0x34] sm:$0xf]
    %v61 = vld [vmem:[#allocation2 + $0x38] sm:$0xf]
    %v62 = vld [vmem:[#allocation2 + $0x3c] sm:$0xf]
    %v63 = vld [vmem:[#allocation5] sm:$0xf]
    %v64 = vld [vmem:[#allocation5 + $0x4] sm:$0xf]
    %v65 = vld [vmem:[#allocation5 + $0x8] sm:$0xf]
    %v66 = vld [vmem:[#allocation5 + $0xc] sm:$0xf]
    %v67 = vld [vmem:[#allocation5 + $0x10] sm:$0xf]
    %v68 = vld [vmem:[#allocation5 + $0x14] sm:$0xf]
    %v69 = vld [vmem:[#allocation5 + $0x18] sm:$0xf]
    %v70 = vld [vmem:[#allocation5 + $0x1c] sm:$0xf]
    %v71 = vld [vmem:[#allocation5 + $0x20] sm:$0xf]
    %v72 = vld [vmem:[#allocation5 + $0x24] sm:$0xf]
    %v73 = vld [vmem:[#allocation5 + $0x28] sm:$0xf]
    %v74 = vld [vmem:[#allocation5 + $0x2c] sm:$0xf]
    %v75 = vld [vmem:[#allocation5 + $0x30] sm:$0xf]
    %v76 = vld [vmem:[#allocation5 + $0x34] sm:$0xf]
    %v77 = vld [vmem:[#allocation5 + $0x38] sm:$0xf]
    %v78 = vld [vmem:[#allocation5 + $0x3c] sm:$0xf]
    %v95 = vunpack.c.l.b16 %v47
    %v96 = vunpack.c.l.b16 %v48
    %v97 = vunpack.c.l.b16 %v49
    %v98 = vunpack.c.l.b16 %v50
    %v99 = vunpack.c.l.b16 %v51
    %v100 = vunpack.c.l.b16 %v52
    %v101 = vunpack.c.l.b16 %v53
    %v102 = vunpack.c.l.b16 %v54
    %v103 = vunpack.c.l.b16 %v55
    %v104 = vunpack.c.l.b16 %v56
    %v105 = vunpack.c.l.b16 %v57
    %v106 = vunpack.c.l.b16 %v58
    %v107 = vunpack.c.l.b16 %v59
    %v108 = vunpack.c.l.b16 %v60
    %v109 = vunpack.c.l.b16 %v61
    %v110 = vunpack.c.l.b16 %v62
    %v111 = vpack.c.b16 %v96, %v95
    %v112 = vpack.c.b16 %v98, %v97
    %v113 = vpack.c.b16 %v100, %v99
    %v114 = vpack.c.b16 %v102, %v101
    %v115 = vpack.c.b16 %v104, %v103
    %v116 = vpack.c.b16 %v106, %v105
    %v117 = vpack.c.b16 %v108, %v107
    %v118 = vpack.c.b16 %v110, %v109
    %v143 = vunpack.c.l.b16 %v63
    %v144 = vunpack.c.l.b16 %v64
    %v145 = vunpack.c.l.b16 %v65
    %v146 = vunpack.c.l.b16 %v66
    %v147 = vunpack.c.l.b16 %v67
    %v148 = vunpack.c.l.b16 %v68
    %v149 = vunpack.c.l.b16 %v69
    %v150 = vunpack.c.l.b16 %v70
    %v151 = vunpack.c.l.b16 %v71
    %v152 = vunpack.c.l.b16 %v72
    %v153 = vunpack.c.l.b16 %v73
    %v154 = vunpack.c.l.b16 %v74
    %v155 = vunpack.c.l.b16 %v75
    %v156 = vunpack.c.l.b16 %v76
    %v157 = vunpack.c.l.b16 %v77
    %v158 = vunpack.c.l.b16 %v78
    %v159 = vpack.c.b16 %v144, %v143
    %v160 = vpack.c.b16 %v146, %v145
    %v161 = vpack.c.b16 %v148, %v147
    %v162 = vpack.c.b16 %v150, %v149
    %v163 = vpack.c.b16 %v152, %v151
    %v164 = vpack.c.b16 %v154, %v153
    %v165 = vpack.c.b16 %v156, %v155
    %v166 = vpack.c.b16 %v158, %v157
    %175 = vmatprep.subr.bf16.mxu0 0
    %176 = vmatpush1.bf16.msra.mxu0 %v159
    %177 = vmatprep.subr.bf16.mxu0 0
    %178 = vmatpush1.bf16.msra.mxu0 %v160
    %179 = vmatprep.subr.bf16.mxu0 0
    %180 = vmatpush1.bf16.msra.mxu0 %v161
    %181 = vmatprep.subr.bf16.mxu0 0
    %182 = vmatpush1.bf16.msra.mxu0 %v162
    %183 = vmatprep.subr.bf16.mxu0 0
    %184 = vmatpush1.bf16.msra.mxu0 %v163
    %185 = vmatprep.subr.bf16.mxu0 0
    %186 = vmatpush1.bf16.msra.mxu0 %v164
    %187 = vmatprep.subr.bf16.mxu0 0
    %188 = vmatpush1.bf16.msra.mxu0 %v165
    %189 = vmatprep.subr.bf16.mxu0 0
    %190 = vmatpush1.bf16.msra.mxu0 %v166
    %191 = vmatprep.subr.bf16.mxu0 0
    %192 = vmatpush1.bf16.msra.mxu0 0
    %193 = vmatprep.subr.bf16.mxu0 0
    %194 = vmatpush1.bf16.msra.mxu0 0
    %195 = vmatprep.subr.bf16.mxu0 0
    %196 = vmatpush1.bf16.msra.mxu0 0
    %197 = vmatprep.subr.bf16.mxu0 0
    %198 = vmatpush1.bf16.msra.mxu0 0
    %199 = vmatprep.subr.bf16.mxu0 0
    %200 = vmatpush1.bf16.msra.mxu0 0
    %201 = vmatprep.subr.bf16.mxu0 0
    %202 = vmatpush1.bf16.msra.mxu0 0
    %203 = vmatprep.subr.bf16.mxu0 0
    %204 = vmatpush1.bf16.msra.mxu0 0
    %205 = vmatprep.subr.bf16.mxu0 0
    %206 = vmatpush1.bf16.msra.mxu0 0
    %207 = vmatprep.mubr.bf16.mxu0 0
    %208 = vmatmul.mubr.bf16.gmra.mrb[0].mxu0 %v111
    %v209 = vpop.f32.mrb[0].mxu0
    %v210 = vadd.f32 0.0, %v209
    %v211 = vpop.f32.mrb[0].mxu0
    %v212 = vpop.f32.mrb[0].mxu0
    %v213 = vadd.f32 0.0, %v212
    %v214 = vpop.f32.mrb[0].mxu0
    %215 = vmatprep.mubr.bf16.mxu0 0
    %216 = vmatmul.mubr.bf16.gmra.mrb[0].mxu0 %v112
    %v217 = vpop.f32.mrb[0].mxu0
    %v218 = vadd.f32 0.0, %v217
    %v219 = vpop.f32.mrb[0].mxu0
    %v220 = vpop.f32.mrb[0].mxu0
    %v221 = vadd.f32 0.0, %v220
    %v222 = vpop.f32.mrb[0].mxu0
    %223 = vmatprep.mubr.bf16.mxu0 0
    %224 = vmatmul.mubr.bf16.gmra.mrb[0].mxu0 %v113
    %v225 = vpop.f32.mrb[0].mxu0
    %v226 = vadd.f32 0.0, %v225
    %v227 = vpop.f32.mrb[0].mxu0
    %v228 = vpop.f32.mrb[0].mxu0
    %v229 = vadd.f32 0.0, %v228
    %v230 = vpop.f32.mrb[0].mxu0
    %231 = vmatprep.mubr.bf16.mxu0 0
    %232 = vmatmul.mubr.bf16.gmra.mrb[0].mxu0 %v114
    %v233 = vpop.f32.mrb[0].mxu0
    %v234 = vadd.f32 0.0, %v233
    %v235 = vpop.f32.mrb[0].mxu0
    %v236 = vpop.f32.mrb[0].mxu0
    %v237 = vadd.f32 0.0, %v236
    %v238 = vpop.f32.mrb[0].mxu0
    %239 = vmatprep.mubr.bf16.mxu0 0
    %240 = vmatmul.mubr.bf16.gmra.mrb[0].mxu0 %v115
    %v241 = vpop.f32.mrb[0].mxu0
    %v242 = vadd.f32 0.0, %v241
    %v243 = vpop.f32.mrb[0].mxu0
    %v244 = vpop.f32.mrb[0].mxu0
    %v245 = vadd.f32 0.0, %v244
    %v246 = vpop.f32.mrb[0].mxu0
    %247 = vmatprep.mubr.bf16.mxu0 0
    %248 = vmatmul.mubr.bf16.gmra.mrb[0].mxu0 %v116
    %v249 = vpop.f32.mrb[0].mxu0
    %v250 = vadd.f32 0.0, %v249
    %v251 = vpop.f32.mrb[0].mxu0
    %v252 = vpop.f32.mrb[0].mxu0
    %v253 = vadd.f32 0.0, %v252
    %v254 = vpop.f32.mrb[0].mxu0
    %255 = vmatprep.mubr.bf16.mxu0 0
    %256 = vmatmul.mubr.bf16.gmra.mrb[0].mxu0 %v117
    %v257 = vpop.f32.mrb[0].mxu0
    %v258 = vadd.f32 0.0, %v257
    %v259 = vpop.f32.mrb[0].mxu0
    %v260 = vpop.f32.mrb[0].mxu0
    %v261 = vadd.f32 0.0, %v260
    %v262 = vpop.f32.mrb[0].mxu0
    %263 = vmatprep.mubr.bf16.mxu0 0
    %264 = vmatmul.mubr.bf16.gmra.mrb[0].mxu0 %v118
    %v265 = vpop.f32.mrb[0].mxu0
    %v266 = vadd.f32 0.0, %v265
    %v267 = vpop.f32.mrb[0].mxu0
    %v268 = vpop.f32.mrb[0].mxu0
    %v269 = vadd.f32 0.0, %v268
    %v270 = vpop.f32.mrb[0].mxu0
    %271 = vdwg.mxu0
    %v272 = vadd.f32 %v210, %v213
    %v273 = vadd.f32 %v272, %v218
    %v274 = vadd.f32 %v273, %v221
    %v275 = vadd.f32 %v274, %v226
    %v276 = vadd.f32 %v275, %v229
    %v277 = vadd.f32 %v276, %v234
    %v278 = vadd.f32 %v277, %v237
    %v279 = vadd.f32 %v278, %v242
    %v280 = vadd.f32 %v279, %v245
    %v281 = vadd.f32 %v280, %v250
    %v282 = vadd.f32 %v281, %v253
    %v283 = vadd.f32 %v282, %v258
    %v284 = vadd.f32 %v283, %v261
    %v285 = vadd.f32 %v284, %v266
    %v286 = vadd.f32 %v285, %v269
    %v287 = vrot.slane %v286, 4
    %v288 = vadd.f32 %v286, %v287
    %v289 = vrot.slane %v288, 2
    %v290 = vadd.f32 %v288, %v289
    %v291 = vrot.slane %v290, 1
    %v292 = vadd.f32 %v290, %v291
    %v293 = vmul.f32 %v210, %v210
    %v294 = vmul.f32 %v213, %v213
    %v295 = vmul.f32 %v218, %v218
    %v296 = vmul.f32 %v221, %v221
    %v297 = vmul.f32 %v226, %v226
    %v298 = vmul.f32 %v229, %v229
    %v299 = vmul.f32 %v234, %v234
    %v300 = vmul.f32 %v237, %v237
    %v301 = vmul.f32 %v242, %v242
    %v302 = vmul.f32 %v245, %v245
    %v303 = vmul.f32 %v250, %v250
    %v304 = vmul.f32 %v253, %v253
    %v305 = vmul.f32 %v258, %v258
    %v306 = vmul.f32 %v261, %v261
    %v307 = vmul.f32 %v266, %v266
    %v308 = vmul.f32 %v269, %v269
    %v309 = vadd.f32 %v293, %v294
    %v310 = vadd.f32 %v309, %v295
    %v311 = vadd.f32 %v310, %v296
    %v312 = vadd.f32 %v311, %v297
    %v313 = vadd.f32 %v312, %v298
    %v314 = vadd.f32 %v313, %v299
    %v315 = vadd.f32 %v314, %v300
    %v316 = vadd.f32 %v315, %v301
    %v317 = vadd.f32 %v316, %v302
    %v318 = vadd.f32 %v317, %v303
    %v319 = vadd.f32 %v318, %v304
    %v320 = vadd.f32 %v319, %v305
    %v321 = vadd.f32 %v320, %v306
    %v322 = vadd.f32 %v321, %v307
    %v323 = vadd.f32 %v322, %v308
    %v324 = vrot.slane %v323, 4
    %v325 = vadd.f32 %v323, %v324
    %v326 = vrot.slane %v325, 2
    %v327 = vadd.f32 %v325, %v326
    %v328 = vrot.slane %v327, 1
    %v329 = vadd.f32 %v327, %v328
    %330 = vrot.lane.b32.xlu0 %v292, 64
    %v331 = vpop.permute.xlu0 %330
    %v332 = vadd.f32 %v292, %v331
    %333 = vrot.lane.b32.xlu0 %v329, 64
    %v334 = vpop.permute.xlu0 %333
    %v335 = vadd.f32 %v329, %v334
    %336 = vrot.lane.b32.xlu0 %v332, 32
    %v337 = vpop.permute.xlu0 %336
    %v338 = vadd.f32 %v332, %v337
    %339 = vrot.lane.b32.xlu0 %v335, 32
    %v340 = vpop.permute.xlu0 %339
    %v341 = vadd.f32 %v335, %v340
    %v342 = vmul.f32 %v338, 0.001953125
    %v343 = vmul.f32 %v341, 0.001953125
    %v344 = vmul.f32 %v342, %v342
    %v345 = vsub.f32 %v343, %v344
    %v346 = vadd.f32 %v345, 1e-05
    %v347 = vrsqrt.pop %v346
    %v348 = vld [vmem:[%s2] sm:$0x1]
    %v349 = vmul.f32 %v348, %v347
    %v350 = vld [vmem:[%s3] sm:$0x1]
    %v351 = vmul.f32 %v342, %v349
    %v352 = vsub.f32 %v350, %v351
    %v354 = vlaneseq
    %v355 = vshrl.u32 %v354, 7
    %v356 = vsub.s32 0, %v355
    %v357 = vrot.slane %v349, %v356
    %358 = vrot.lane.b32.xlu0 %v357, 32
    %v359 = vpop.permute.xlu0 %358
    %361 = vrot.lane.b32.xlu0 %v357, 64
    %v362 = vpop.permute.xlu0 %361
    %364 = vrot.lane.b32.xlu0 %v357, 96
    %v365 = vpop.permute.xlu0 %364
    %vm367 = vcmask 261120
    %v368 = vsel %vm367, %v349, %v359
    %vm369 = vcmask 523264
    %v370 = vsel %vm369, %v368, %v362
    %vm371 = vcmask 785408
    %v372 = vsel %vm371, %v370, %v365
    %v374 = vlaneseq
    %v375 = vshrl.u32 %v374, 7
    %v376 = vsub.s32 0, %v375
    %v377 = vrot.slane %v352, %v376
    %378 = vrot.lane.b32.xlu0 %v377, 32
    %v379 = vpop.permute.xlu0 %378
    %381 = vrot.lane.b32.xlu0 %v377, 64
    %v382 = vpop.permute.xlu0 %381
    %384 = vrot.lane.b32.xlu0 %v377, 96
    %v385 = vpop.permute.xlu0 %384
    %v387 = vsel %vm367, %v352, %v379
    %v388 = vsel %vm369, %v387, %v382
    %v389 = vsel %vm371, %v388, %v385
    %v390 = vlaneseq
    %v391 = vshrl.u32 %v390, 7
    %v392 = vsub.s32 0, %v391
    %v393 = vrot.slane %v372, %v392
    %v394 = vmul.f32 %v210, %v393
    %v395 = vmul.f32 %v213, %v393
    %v396 = vmul.f32 %v218, %v393
    %v397 = vmul.f32 %v221, %v393
    %v398 = vmul.f32 %v226, %v393
    %v399 = vmul.f32 %v229, %v393
    %v400 = vmul.f32 %v234, %v393
    %v401 = vmul.f32 %v237, %v393
    %v402 = vmul.f32 %v242, %v393
    %v403 = vmul.f32 %v245, %v393
    %v404 = vmul.f32 %v250, %v393
    %v405 = vmul.f32 %v253, %v393
    %v406 = vmul.f32 %v258, %v393
    %v407 = vmul.f32 %v261, %v393
    %v408 = vmul.f32 %v266, %v393
    %v409 = vmul.f32 %v269, %v393
    %v410 = vlaneseq
    %v411 = vshrl.u32 %v410, 7
    %v412 = vsub.s32 0, %v411
    %v413 = vrot.slane %v389, %v412
    %v414 = vadd.f32 %v394, %v413
    %v415 = vadd.f32 %v395, %v413
    %v416 = vadd.f32 %v396, %v413
    %v417 = vadd.f32 %v397, %v413
    %v418 = vadd.f32 %v398, %v413
    %v419 = vadd.f32 %v399, %v413
    %v420 = vadd.f32 %v400, %v413
    %v421 = vadd.f32 %v401, %v413
    %v422 = vadd.f32 %v402, %v413
    %v423 = vadd.f32 %v403, %v413
    %v424 = vadd.f32 %v404, %v413
    %v425 = vadd.f32 %v405, %v413
    %v426 = vadd.f32 %v406, %v413
    %v427 = vadd.f32 %v407, %v413
    %v428 = vadd.f32 %v408, %v413
    %v429 = vadd.f32 %v409, %v413
    %v430 = vmul.f32 %v414, 0.01
    %v431 = vmul.f32 %v415, 0.01
    %v432 = vmul.f32 %v416, 0.01
    %v433 = vmul.f32 %v417, 0.01
    %v434 = vmul.f32 %v418, 0.01
    %v435 = vmul.f32 %v419, 0.01
    %v436 = vmul.f32 %v420, 0.01
    %v437 = vmul.f32 %v421, 0.01
    %v438 = vmul.f32 %v422, 0.01
    %v439 = vmul.f32 %v423, 0.01
    %v440 = vmul.f32 %v424, 0.01
    %v441 = vmul.f32 %v425, 0.01
    %v442 = vmul.f32 %v426, 0.01
    %v443 = vmul.f32 %v427, 0.01
    %v444 = vmul.f32 %v428, 0.01
    %v445 = vmul.f32 %v429, 0.01
    %v446 = vmax.f32 %v414, %v430
    %v447 = vmax.f32 %v415, %v431
    %v448 = vmax.f32 %v416, %v432
    %v449 = vmax.f32 %v417, %v433
    %v450 = vmax.f32 %v418, %v434
    %v451 = vmax.f32 %v419, %v435
    %v452 = vmax.f32 %v420, %v436
    %v453 = vmax.f32 %v421, %v437
    %v454 = vmax.f32 %v422, %v438
    %v455 = vmax.f32 %v423, %v439
    %v456 = vmax.f32 %v424, %v440
    %v457 = vmax.f32 %v425, %v441
    %v458 = vmax.f32 %v426, %v442
    %v459 = vmax.f32 %v427, %v443
    %v460 = vmax.f32 %v428, %v444
    %v461 = vmax.f32 %v429, %v445
    %462 = vst [vmem:[#allocation7] sm:$0xff] %v446
    %463 = vst [vmem:[#allocation7 + $0x8] sm:$0xff] %v447
    %464 = vst [vmem:[#allocation7 + $0x10] sm:$0xff] %v448
    %465 = vst [vmem:[#allocation7 + $0x18] sm:$0xff] %v449
    %466 = vst [vmem:[#allocation7 + $0x20] sm:$0xff] %v450
    %467 = vst [vmem:[#allocation7 + $0x28] sm:$0xff] %v451
    %468 = vst [vmem:[#allocation7 + $0x30] sm:$0xff] %v452
    %469 = vst [vmem:[#allocation7 + $0x38] sm:$0xff] %v453
    %470 = vst [vmem:[#allocation7 + $0x40] sm:$0xff] %v454
    %471 = vst [vmem:[#allocation7 + $0x48] sm:$0xff] %v455
    %472 = vst [vmem:[#allocation7 + $0x50] sm:$0xff] %v456
    %473 = vst [vmem:[#allocation7 + $0x58] sm:$0xff] %v457
    %474 = vst [vmem:[#allocation7 + $0x60] sm:$0xff] %v458
    %475 = vst [vmem:[#allocation7 + $0x68] sm:$0xff] %v459
    %476 = vst [vmem:[#allocation7 + $0x70] sm:$0xff] %v460
    %477 = vst [vmem:[#allocation7 + $0x78] sm:$0xff] %v461
    // Predicated region
    $region26: #{tpu_custom_call.1} parent=1 // pred_check
      _
    $region27: #{tpu_custom_call.1} parent=1 // pred_check_branch
      %479 = sbr.rel (0) target = $region29
    $region28: #{tpu_custom_call.1} parent=1 // pred_region
      %s481 = ssub.s32 2048, 2048
      %482 = vsyncadd [#allocation4], %s481
      %s483 = sshll.u32 [#allocation7], 4
      %s484 = int_to_ptr.vmem [resolvable:$true] %s483
      %489 = dma.vmem_to_hbm [thread:$0]  %s484, 2048, %s4, [#allocation4], 128, 128, 8
    $region29: #{tpu_custom_call.1} parent=1 // pred_fallthru
      _
    // Predicated region
    $region30: #{tpu_custom_call.1} parent=1 // pred_check
      _
    $region31: #{tpu_custom_call.1} parent=1 // pred_check_branch
      %491 = sbr.rel (0) target = $region33
    $region32: #{tpu_custom_call.1} parent=1 // pred_region
      %492 = dma.done [#allocation4], 2048
    $region33: #{tpu_custom_call.1} parent=1 // pred_fallthru
      _
    %493 = vsyncpa [#allocation3], 1
    %494 = vsyncpa [#allocation6], 1
    %495 = vsyncpa [#allocation4], 1

</llo_original>
